<compile_context>
chip_gen: v5e
topology: v5e:2x2
jax: 0.10.0
libtpu: 0.0.40
codegen_flags: <defaults>
</compile_context>

<pallas_src>
import functools

import jax
import jax.numpy as jnp
from jax.experimental import pallas as pl
from jax.experimental.pallas import tpu as pltpu


# ----------------------------------------------------------------------------
# Parameter construction (mirrors GetV.__init__) — used only for the reference.
# ----------------------------------------------------------------------------
def make_getv_params(slices):
    (d_in, w_pos, st_, sym1_, sym2_, pos1_, pos2_, pos3_,
     scr1_, scr2_, scr3_, scr4_, scr5_) = slices

    w = jnp.eye(d_in, dtype=jnp.float32)
    b = jnp.zeros((d_in,), dtype=jnp.float32)
    w = w.at[scr4_ + 1, scr4_].set(-1.0)
    w = w.at[scr4_ + 1, scr4_ + 1].set(1.0)
    w = w.at[scr4_ + 2, scr4_].set(-1.0)
    w = w.at[scr4_ + 2, scr4_ + 1].set(-1.0)
    b = b.at[scr4_ + 2].set(1.0)
    return w, b


# ----------------------------------------------------------------------------
# Kernels
# ----------------------------------------------------------------------------
def _getv_lane_dense_kernel(x_ref, o_ref, *, d, c1, c2):
    """x_ref/o_ref: (tmv, 128) lane-dense view packing 128//d feature rows."""
    x = x_ref[...].astype(jnp.float32)
    # Column masks at vreg width only (1, 128): d divides 128 => power of two.
    lane = jax.lax.broadcasted_iota(jnp.int32, (1, 128), 1)
    col = lane & (d - 1)
    is_c1 = col == c1
    is_c2 = col == c2
    # Neighbouring feature columns of the same logical row: roll by +1 / +2
    # brings x[:, c-1] / x[:, c-2] to lane c (XLU op, off the VPU path).
    # Wrap-around across the 128-lane row is safe because c1 >= 1 and c2 >= 2
    # within each packed group of width d (scr4_ >= 0), so the lanes selected
    # by is_c1 / is_c2 never read across a group/row boundary.
    xm1 = pltpu.roll(x, shift=1, axis=1)
    xm2 = pltpu.roll(x, shift=2, axis=1)
    y = jnp.maximum(x, 0.0)                                  # identity rows
    y = jnp.where(is_c1, jnp.maximum(x - xm1, 0.0), y)       # x[c1]-x[c0]
    y = jnp.where(is_c2, jnp.maximum(x - xm1 - xm2 + 1.0, 0.0), y)
    o_ref[...] = y.astype(o_ref.dtype)


def _getv_rowmajor_kernel(x_ref, o_ref, *, c0, c1, c2):
    """Fallback for feature dims that don't pack evenly into 128 lanes.

    Last-dim D < 128 means masked (partial-lane) stores; only used when the
    lane-dense repack is impossible.
    """
    x = x_ref[...].astype(jnp.float32)                       # (tm, D)
    y = jnp.maximum(x, 0.0)
    a0 = x[:, c0:c0 + 1]
    a1 = x[:, c1:c1 + 1]
    a2 = x[:, c2:c2 + 1]
    v2 = jnp.maximum(a1 - a0, 0.0)
    v3 = jnp.maximum(a2 - a0 - a1 + 1.0, 0.0)
    col = jax.lax.broadcasted_iota(jnp.int32, (1, x.shape[1]), 1)
    y = jnp.where(col == c1, v2, y)
    y = jnp.where(col == c2, v3, y)
    o_ref[...] = y.astype(o_ref.dtype)


# ----------------------------------------------------------------------------
# Helpers
# ----------------------------------------------------------------------------
def _getv_jnp(x, c0, c1, c2):
    """Fused XLA path for tiny inputs (launch overhead > traffic)."""
    xf = x.astype(jnp.float32)
    y = jnp.maximum(xf, 0.0)
    v2 = jnp.maximum(xf[..., c1] - xf[..., c0], 0.0)
    v3 = jnp.maximum(xf[..., c2] - xf[..., c0] - xf[..., c1] + 1.0, 0.0)
    y = y.at[..., c1].set(v2)
    y = y.at[..., c2].set(v3)
    return y.astype(x.dtype)


def _pick_rows(n_rows, row_bytes, sub, block_bytes, min_steps):
    """Pick a row-tile size: <= block_bytes per block, >= ~256 KiB per block,
    and >= min_steps grid steps when there's enough work (v7x: 2 TCs x >=4)."""
    floor_rows = max(sub, ((256 << 10) // row_bytes) // sub * sub)
    cap_rows = max(sub, (block_bytes // row_bytes) // sub * sub)
    want = -(-n_rows // min_steps)               # ceil: rows/block for min_steps blocks
    want = -(-want // sub) * sub                 # round up to sublane multiple
    rows = min(cap_rows, max(want, floor_rows))
    if rows >= n_rows:
        rows = n_rows                            # single full-extent block
    return rows
    # NB: the last grid block may be ragged (n_rows % rows != 0); Pallas masks
    # the edge writeback, so computing relu of the padding is harmless.


def _vmem_limit(block_nbytes):
    # 2x double-buffered input slabs + 2x output slabs + f32 temporaries/headroom.
    return int(min(64 << 20, 4 * block_nbytes + (16 << 20)))


# ----------------------------------------------------------------------------
# Wrapper
# ----------------------------------------------------------------------------
def getv_forward(tgt, scr4_, *, block_bytes=2 << 20, min_steps=8,
                 small_bytes=256 << 10, force_pallas=False):
    """relu(tgt @ W^T + b) with the structured GetV weights, fused in Pallas."""
    assert tgt.ndim == 3, "expected (batch, seq, d_in)"
    B, S, D = tgt.shape
    assert 0 <= scr4_ and scr4_ + 2 < D, "scr4_ slice must fit inside the feature dim"
    M = B * S
    c0, c1, c2 = scr4_, scr4_ + 1, scr4_ + 2

    itemsize = jnp.dtype(tgt.dtype).itemsize
    total_bytes = M * D * itemsize

    # Tiny inputs: plain fused XLA is strictly faster than a pallas_call launch.
    if total_bytes <= small_bytes and not force_pallas:
        return _getv_jnp(tgt, c0, c1, c2)

    sub = max(8, 32 // itemsize)                 # sublane multiple: f32->8, bf16->16, i8->32
    cost = pl.CostEstimate(flops=5 * M * D, transcendentals=0,
                           bytes_accessed=2 * total_bytes)

    if (128 % D == 0) and ((M * D) % 128 == 0):
        # Lane-dense path: view (M, D) as (M*D/128, 128) so every load/store
        # uses all 128 lanes (no masked vst on the D-wide axis).
        Mv = (M * D) // 128
        xv = tgt.reshape(Mv, 128)                # contiguous reshape: free
        row_bytes = 128 * itemsize
        tmv = _pick_rows(Mv, row_bytes, sub, block_bytes, min_steps)
        grid = (pl.cdiv(Mv, tmv),)
        kernel = functools.partial(_getv_lane_dense_kernel, d=D, c1=c1, c2=c2)
        out = pl.pallas_call(
            kernel,
            out_shape=jax.ShapeDtypeStruct((Mv, 128), tgt.dtype),
            grid_spec=pltpu.PrefetchScalarGridSpec(
                num_scalar_prefetch=0,
                grid=grid,
                in_specs=[pl.BlockSpec((tmv, 128), lambda i: (i, 0))],
                out_specs=pl.BlockSpec((tmv, 128), lambda i: (i, 0)),
            ),
            compiler_params=pltpu.CompilerParams(
                dimension_semantics=("parallel",),
                vmem_limit_bytes=_vmem_limit(tmv * row_bytes)),
            cost_estimate=cost,
        )(xv)
        return out.reshape(B, S, D)

    # Fallback: keep (M, D) layout; still no matmul / weight / bias stream.
    # TODO(synk): extend the lane-dense repack to the (M*D) % 128 == 0 but
    # 128 % D != 0 case (needs cross-row neighbour handling at lanes 0/1).
    x2d = tgt.reshape(M, D)
    row_bytes = D * itemsize
    tm = _pick_rows(M, row_bytes, sub, block_bytes, min_steps)
    grid = (pl.cdiv(M, tm),)
    kernel = functools.partial(_getv_rowmajor_kernel, c0=c0, c1=c1, c2=c2)
    out = pl.pallas_call(
        kernel,
        out_shape=jax.ShapeDtypeStruct((M, D), tgt.dtype),
        grid_spec=pltpu.PrefetchScalarGridSpec(
            num_scalar_prefetch=0,
            grid=grid,
            in_specs=[pl.BlockSpec((tm, D), lambda i: (i, 0))],
            out_specs=pl.BlockSpec((tm, D), lambda i: (i, 0)),
        ),
        compiler_params=pltpu.CompilerParams(
            dimension_semantics=("parallel",),
            vmem_limit_bytes=_vmem_limit(tm * row_bytes)),
        cost_estimate=cost,
    )(x2d)
    return out.reshape(B, S, D)


# ----------------------------------------------------------------------------
# Demo / self-test
# ----------------------------------------------------------------------------
if __name__ == "__main__":
    def ref_fn(x, w, b):
        return jnp.maximum(jnp.einsum("bsd,od->bso", x.astype(jnp.float32), w) + b, 0.0)

    d_in = 32
    scr4_ = 24                      # needs scr4_ + 2 < d_in
    slices = (d_in, 2, 3, 4, 5, 6, 7, 8, 10, 12, 14, scr4_, 28)
    w, b = make_getv_params(slices)

    # Small shape consistent with the module: (batch=2, seq=8, hidden=32).
    B, S = 2, 8
    tgt = jax.random.normal(jax.random.PRNGKey(0), (B, S, d_in), dtype=jnp.float32)
    ref = ref_fn(tgt, w, b)

    # Small shape forced through the Pallas lane-dense kernel.
    out = jax.block_until_ready(getv_forward(tgt, scr4_, force_pallas=True))
    assert out.shape == (B, S, d_in)
    assert jnp.allclose(out, ref, atol=1e-5, rtol=1e-5), "lane-dense path mismatch"

    # Default path for tiny inputs (fused XLA early-out).
    out_small = jax.block_until_ready(getv_forward(tgt, scr4_))
    assert jnp.allclose(out_small, ref, atol=1e-5, rtol=1e-5), "small-input path mismatch"

    # Larger f32 run: multi-step "parallel" grid (>= 8 blocks, pipelined DMA).
    tgt2 = jax.random.normal(jax.random.PRNGKey(1), (2, 8192, d_in), dtype=jnp.float32)
    out2 = jax.block_until_ready(getv_forward(tgt2, scr4_))
    ref2 = ref_fn(tgt2, w, b)
    assert jnp.allclose(out2, ref2, atol=1e-5, rtol=1e-5), "tiled f32 path mismatch"

    # bf16 run: sublane multiple 16, fixup arithmetic done in f32 in-kernel.
    tgt3 = jax.random.normal(jax.random.PRNGKey(2), (4, 2048, d_in), dtype=jnp.bfloat16)
    out3 = jax.block_until_ready(getv_forward(tgt3, scr4_))
    ref3 = ref_fn(tgt3, w, b).astype(jnp.bfloat16)
    assert jnp.allclose(out3.astype(jnp.float32), ref3.astype(jnp.float32),
                        atol=2e-2, rtol=2e-2), "bf16 path mismatch"

    # Fallback (D does not divide 128): row-major Pallas kernel.
    d_fb, scr4_fb = 48, 40
    slices_fb = (d_fb, 2, 3, 4, 5, 6, 7, 8, 10, 12, 14, scr4_fb, 44)
    w_fb, b_fb = make_getv_params(slices_fb)
    tgt_fb = jax.random.normal(jax.random.PRNGKey(3), (2, 8, d_fb), dtype=jnp.float32)
    out_fb = jax.block_until_ready(getv_forward(tgt_fb, scr4_fb, force_pallas=True))
    ref_fb = ref_fn(tgt_fb, w_fb, b_fb)
    assert jnp.allclose(out_fb, ref_fb, atol=1e-5, rtol=1e-5), "fallback path mismatch"

    print("KERNEL_OK")
</pallas_src>

<mosaic_0001>
module attributes {stable_mosaic.version = 11 : i64} {
  func.func @_getv_lane_dense_kernel(%arg0: i32, %arg1: memref<4x128xf32, #tpu.memory_space<vmem>>, %arg2: memref<4x128xf32, #tpu.memory_space<vmem>>) attributes {dimension_semantics = [#tpu.dimension_semantics<parallel>], iteration_bounds = array<i64: 1>, scalar_prefetch = 0 : i64, scratch_operands = 0 : i64, tpu.core_type = #tpu.core_type<tc>, window_params = [{transform_indices = @transform_0, window_bounds = array<i64: 4, 128>}, {transform_indices = @transform_1, window_bounds = array<i64: 4, 128>}]} {
    %c0 = arith.constant 0 : index
    %c0_0 = arith.constant 0 : index
    %0 = vector.load %arg1[%c0, %c0_0] : memref<4x128xf32, #tpu.memory_space<vmem>>, vector<4x128xf32>
    %1 = tpu.iota {dimensions = array<i32: 1>} : vector<1x128xi32>
    %c31_i32 = arith.constant 31 : i32
    %2 = vector.broadcast %c31_i32 : i32 to vector<1x128xi32>
    %3 = arith.andi %1, %2 : vector<1x128xi32>
    %c25_i32 = arith.constant 25 : i32
    %4 = vector.broadcast %c25_i32 : i32 to vector<1x128xi32>
    %5 = arith.cmpi eq, %3, %4 : vector<1x128xi32>
    %c26_i32 = arith.constant 26 : i32
    %6 = vector.broadcast %c26_i32 : i32 to vector<1x128xi32>
    %7 = arith.cmpi eq, %3, %6 : vector<1x128xi32>
    %c1_i32 = arith.constant 1 : i32
    %8 = tpu.dynamic_rotate %0 by %c1_i32 dim 1 : vector<4x128xf32>, i32 -> vector<4x128xf32>
    %c2_i32 = arith.constant 2 : i32
    %9 = tpu.dynamic_rotate %0 by %c2_i32 dim 1 : vector<4x128xf32>, i32 -> vector<4x128xf32>
    %cst = arith.constant 0.000000e+00 : f32
    %10 = vector.broadcast %cst : f32 to vector<4x128xf32>
    %11 = arith.maximumf %0, %10 : vector<4x128xf32>
    %12 = arith.subf %0, %8 : vector<4x128xf32>
    %cst_1 = arith.constant 0.000000e+00 : f32
    %13 = vector.broadcast %cst_1 : f32 to vector<4x128xf32>
    %14 = arith.maximumf %12, %13 : vector<4x128xf32>
    %15 = vector.shape_cast %5 : vector<1x128xi1> to vector<1x128xi1>
    %16 = vector.broadcast %15 : vector<1x128xi1> to vector<4x128xi1>
    %17 = arith.select %16, %14, %11 : vector<4x128xi1>, vector<4x128xf32>
    %18 = arith.subf %0, %8 : vector<4x128xf32>
    %19 = arith.subf %18, %9 : vector<4x128xf32>
    %cst_2 = arith.constant 1.000000e+00 : f32
    %20 = vector.broadcast %cst_2 : f32 to vector<4x128xf32>
    %21 = arith.addf %19, %20 : vector<4x128xf32>
    %cst_3 = arith.constant 0.000000e+00 : f32
    %22 = vector.broadcast %cst_3 : f32 to vector<4x128xf32>
    %23 = arith.maximumf %21, %22 : vector<4x128xf32>
    %24 = vector.shape_cast %7 : vector<1x128xi1> to vector<1x128xi1>
    %25 = vector.broadcast %24 : vector<1x128xi1> to vector<4x128xi1>
    %26 = arith.select %25, %23, %17 : vector<4x128xi1>, vector<4x128xf32>
    %c0_4 = arith.constant 0 : index
    %c0_5 = arith.constant 0 : index
    %27 = vector.load %arg2[%c0_4, %c0_5] : memref<4x128xf32, #tpu.memory_space<vmem>>, vector<4x128xf32>
    tpu.vector_store %arg2[%c0_4, %c0_5], %26 {strides = array<i32>} : memref<4x128xf32, #tpu.memory_space<vmem>>, vector<4x128xf32>,
    return
  }
  func.func @transform_0(%arg0: i32) -> (i32, i32) {
    %c0_i32 = arith.constant 0 : i32
    %c0_i32_0 = arith.constant 0 : i32
    return %arg0, %c0_i32 : i32, i32
  }
  func.func @transform_1(%arg0: i32) -> (i32, i32) {
    %c0_i32 = arith.constant 0 : i32
    %c0_i32_0 = arith.constant 0 : i32
    return %arg0, %c0_i32 : i32, i32
  }
}

</mosaic_0001>

<llo_original>
// kernel: tpu_custom_call.1
$region0: #{tpu_custom_call.1}
  #allocation0 [shape = 'u32[]', space=smem, size = 0x4, offset = 0x4, fixed_abs, tag = 'smem constant byte address 0x4 - core index']
  #allocation1 [shape = 'u32[72,128]{1,0:T(1,128)}', space=vmem, size = 0x9000, scoped, tag = 'internal scratch']
  %s0 = inlined_call_operand.hbm [shape: f32[4,128], index: 0, kind: input, shape index: {}]
  %s1 = inlined_call_operand.hbm [shape: f32[4,128], index: 1, kind: output, shape index: {}]
  %s2 = sld [smem:[#allocation0]]
  $region18: #{tpu_custom_call.1} parent=0
    _
  %s4 = ssub.s32 1, %s2
  %s5 = scalar_select 0, %s4, %s2
  $region1: #{tpu_custom_call.1} parent=0
    #allocation2 [shape = 'u8[2048]{0}', space=vmem, size = 0x800, scoped, tag = 'input window, operand 0, single buffered']
    #allocation3 [shape = 's32[1]{0}', space=sflag, size = 0x4, scoped, tag = 'scoped memory for tpu_custom_call.1']
    #allocation4 [shape = 's32[1]{0}', space=sflag, size = 0x4, scoped, tag = 'scoped memory for tpu_custom_call.1']
    #allocation5 [shape = 'u8[2048]{0}', space=vmem, size = 0x800, scoped, tag = 'output window, operand 0, single buffered']
    %6 = vsyncpa [#allocation3], 0
    %7 = vsyncpa [#allocation4], 0
    // Predicated region
    $region2: #{tpu_custom_call.1} parent=1 // pred_check
      _
    $region3: #{tpu_custom_call.1} parent=1 // pred_check_branch
      %9 = sbr.rel (0) target = $region5
    $region4: #{tpu_custom_call.1} parent=1 // pred_region
      %11 = vsyncadd [#allocation3], 0
      %s13 = sshll.u32 %s0, 4
      %s14 = int_to_ptr.hbm [resolvable:$true] %s13
      %s15 = sshll.u32 [#allocation2], 4
      %s16 = int_to_ptr.vmem [resolvable:$true] %s15
      %18 = dma.hbm_to_vmem [thread:$0]  %s14, 64, %s16, [#allocation3]
    $region5: #{tpu_custom_call.1} parent=1 // pred_fallthru
      _
    // Predicated region
    $region6: #{tpu_custom_call.1} parent=1 // pred_check
      _
    $region7: #{tpu_custom_call.1} parent=1 // pred_check_branch
      %20 = sbr.rel (0) target = $region9
    $region8: #{tpu_custom_call.1} parent=1 // pred_region
      %22 = dma.done [#allocation3], 64
    $region9: #{tpu_custom_call.1} parent=1 // pred_fallthru
      _
    %v23 = vld [vmem:[#allocation2] sm:$0xf]
    %v24 = vlaneseq
    %v25 = vand.u32 %v24, 127
    %v26 = vand.u32 %v25, 31
    %vm27 = vcmp.eq.s32.totalorder %v26, 25
    %vm28 = vcmp.eq.s32.totalorder %v26, 26
    %29 = vrot.lane.b32.xlu0 %v23, 1
    %v30 = vpop.permute.xlu0 %29
    %31 = vrot.lane.b32.xlu0 %v23, 2
    %v32 = vpop.permute.xlu0 %31
    %v33 = vmax.f32 %v23, 0.0
    %v34 = vsub.f32 %v23, %v30
    %v35 = vmax.f32 %v34, 0.0
    %v36 = vsel %vm27, 1, 0
    %vm37 = vcmp.eq.s32.totalorder %v36, 1
    %v38 = vsel %vm37, %v35, %v33
    %v39 = vsub.f32 %v34, %v32
    %v40 = vadd.f32 %v39, 1.0
    %v41 = vmax.f32 %v40, 0.0
    %v42 = vsel %vm28, 1, 0
    %vm43 = vcmp.eq.s32.totalorder %v42, 1
    %v44 = vsel %vm43, %v41, %v38
    %45 = vst [vmem:[#allocation5] sm:$0xf] %v44
    // Predicated region
    $region10: #{tpu_custom_call.1} parent=1 // pred_check
      _
    $region11: #{tpu_custom_call.1} parent=1 // pred_check_branch
      %47 = sbr.rel (0) target = $region13
    $region12: #{tpu_custom_call.1} parent=1 // pred_region
      %49 = vsyncadd [#allocation4], 0
      %s51 = sshll.u32 [#allocation5], 4
      %s52 = int_to_ptr.vmem [resolvable:$true] %s51
      %s53 = sshll.u32 %s1, 4
      %s54 = int_to_ptr.hbm [resolvable:$true] %s53
      %56 = dma.vmem_to_hbm [thread:$0]  %s52, 64, %s54, [#allocation4]
    $region13: #{tpu_custom_call.1} parent=1 // pred_fallthru
      _
    // Predicated region
    $region14: #{tpu_custom_call.1} parent=1 // pred_check
      _
    $region15: #{tpu_custom_call.1} parent=1 // pred_check_branch
      %58 = sbr.rel (0) target = $region17
    $region16: #{tpu_custom_call.1} parent=1 // pred_region
      %60 = dma.done [#allocation4], 64
    $region17: #{tpu_custom_call.1} parent=1 // pred_fallthru
      _
    %61 = vsyncpa [#allocation3], 1
    %62 = vsyncpa [#allocation4], 1

</llo_original>
